<compile_context>
chip_gen: v7x
topology: tpu7x:2x2x1
jax: 0.10.0
libtpu: 0.0.40
codegen_flags: <defaults>
</compile_context>

<pallas_src>
import numpy as np
import jax
import jax.numpy as jnp
from jax.experimental import pallas as pl
from jax.experimental.pallas import tpu as pltpu

ORIENTATIONS = [0, 45, 90, 135, -45, -135]
FREQUENCIES = [0.1, 0.25, 0.4, 0.5, 0.6, 0.7, 0.8, 0.9]
SIGMA = 1.0
KH = KW = 8                                          # even 8x8 taps (see note)
NUM_TAPS = KH * KW                                   # 64
NUM_FILTERS = len(ORIENTATIONS) * len(FREQUENCIES)   # 48

PAD_TOP = PAD_LEFT = 3                               # PyTorch 'same', even kernel
PAD_BOT = PAD_RIGHT = 4


def _gabor_kernel(frequency, theta_deg, sigma=SIGMA):
    """Exact port of GaborFeatures._gabor_kernel (numpy, deterministic)."""
    theta = theta_deg / 180.0 * np.pi
    ks = int(2 * np.ceil(2.5 * sigma) + 1)           # 7
    y, x = np.mgrid[-ks // 2: ks // 2 + 1, -ks // 2: ks // 2 + 1]  # -4..3 => 8x8
    x_t = x * np.cos(theta) + y * np.sin(theta)
    y_t = -x * np.sin(theta) + y * np.cos(theta)
    gb = np.exp(-0.5 * (x_t ** 2 + y_t ** 2) / sigma ** 2) * np.cos(
        2 * np.pi * frequency * x_t)
    return gb.astype(np.float32)                     # torch.FloatTensor => f32


def gabor_bank():
    """(48, 8, 8) filter bank; channel order = theta-major, freq-minor."""
    ks = [_gabor_kernel(f, t) for t in ORIENTATIONS for f in FREQUENCIES]
    return np.stack(ks, axis=0)


def _cdiv(a, b):
    return -(-a // b)


def _round_up(a, b):
    return _cdiv(a, b) * b


def _choose_tile(H, W, target_pix=16384):
    """Pick a 128-multiple pixel-tile size over the flattened (row, col) axis.

    Returns (tpix, n_tiles, p_pad, h_pad):
      tpix    : pixels per grid step (always % 128 == 0 -> lane-dense stores)
      n_tiles : grid steps per image
      p_pad   : n_tiles * tpix   (padded flattened pixel count, >= H*W)
      h_pad   : padded row count such that h_pad * W >= p_pad
    """
    total = H * W
    tpix = min(_round_up(max(target_pix, 128), 128), _round_up(total, 128))
    n_tiles = _cdiv(total, tpix)
    tpix = _round_up(_cdiv(total, n_tiles), 128)     # rebalance -> minimal padding
    p_pad = n_tiles * tpix
    h_pad = _cdiv(p_pad, W)
    return tpix, n_tiles, p_pad, h_pad


def _make_conv_kernel(W, tpix, compute_dtype):
    """Fused im2col + GEMM: out(48, tpix) = W_bank(48,64) @ patches(64, tpix)."""

    def kernel(slab_ref, w_ref, o_ref, patches_ref):
        # slab_ref   : (1, 1, 8, tpix + 7*W) f32   per-tile column-shifted rows
        # w_ref      : (48, 64) compute_dtype      filter taps, tap index = p*8+q
        # o_ref      : (1, 48, tpix) f32           NCHW-native, lane-dense pixels
        # patches_ref: VMEM (64, tpix) compute_dtype scratch
        #
        # Row p*8+q of the patch matrix is slab[q, p*W : p*W + tpix]:
        #   patches[p*8+q, j] = padded_image[row(j)+p, col(j)+q]
        for p in range(KH):
            patches_ref[p * KW:(p + 1) * KW, :] = (
                slab_ref[0, 0, :, p * W: p * W + tpix].astype(compute_dtype))
        o_ref[0] = jnp.dot(w_ref[...], patches_ref[...],
                           preferred_element_type=jnp.float32)

    return kernel


def gabor_features(x, *, compute_dtype=jnp.bfloat16, target_pix=16384):
    """x: (N, 1, H, W) float32 NCHW  ->  (N, 48, H, W) float32 NCHW."""
    N, C, H, W = x.shape
    assert C == 1, "F.conv2d with a (1,1,8,8) weight requires 1 input channel"
    x = x.astype(jnp.float32)

    w_mat = jnp.asarray(gabor_bank().reshape(NUM_FILTERS, NUM_TAPS)
                        ).astype(compute_dtype)                   # (48, 64)

    tpix, n_tiles, p_pad, h_pad = _choose_tile(H, W, target_pix)
    slab_len = tpix + (KH - 1) * W

    # --- XLA glue -----------------------------------------------------------
    # 'same' padding for the even kernel => (top,left)=3, (bottom,right)=4,
    # plus extra zero rows so the padded image covers every (padded) tile.
    xp = jnp.pad(x[:, 0],
                 ((0, 0),
                  (PAD_TOP, PAD_BOT + (h_pad - H)),
                  (PAD_LEFT, PAD_RIGHT)))                         # (N, h_pad+7, W+7)
    # 8 column-shifted copies, flattened over (row, col): every tap of an output
    # pixel becomes a contiguous lane slice.
    shifted = jnp.stack([xp[:, :, q:q + W] for q in range(KW)], axis=1)
    flat = shifted.reshape(N, KW, (h_pad + KH - 1) * W)           # (N, 8, lp)
    # Small OVERLAPPING per-tile slabs instead of a whole-image VMEM-resident
    # strip: each grid step only needs its own (8, tpix + 7W) block.
    slabs = jnp.stack(
        [flat[:, :, t * tpix: t * tpix + slab_len] for t in range(n_tiles)],
        axis=1)                                                   # (N, n_tiles, 8, slab_len)

    # --- VMEM budget (double-buffered in/out blocks + patch scratch) ---------
    bpe = np.dtype(compute_dtype).itemsize
    vmem_need = (2 * KW * slab_len * 4
                 + 2 * NUM_FILTERS * NUM_TAPS * bpe
                 + 2 * NUM_FILTERS * tpix * 4
                 + NUM_TAPS * tpix * bpe)
    vmem_limit = int(min(max(2 * vmem_need, 32 * 2 ** 20), 64 * 2 ** 20))

    flops = 2 * N * p_pad * NUM_TAPS * NUM_FILTERS
    bytes_accessed = int(4 * slabs.size + bpe * w_mat.size
                         + 4 * N * NUM_FILTERS * p_pad)

    out = pl.pallas_call(
        _make_conv_kernel(W, tpix, compute_dtype),
        out_shape=jax.ShapeDtypeStruct((N, NUM_FILTERS, p_pad), jnp.float32),
        grid_spec=pltpu.PrefetchScalarGridSpec(
            num_scalar_prefetch=0,
            # larger axis first so a 2-TC chip (v7x) gets balanced work even at N=1
            grid=(n_tiles, N),
            in_specs=[
                # per-tile slab: small block, re-DMA'd (and prefetched) per step
                pl.BlockSpec((1, 1, KW, slab_len), lambda t, n: (n, t, 0, 0)),
                # tiny filter matrix; constant block index => fetched once
                pl.BlockSpec((NUM_FILTERS, NUM_TAPS), lambda t, n: (0, 0)),
            ],
            out_specs=pl.BlockSpec((1, NUM_FILTERS, tpix),
                                   lambda t, n: (n, 0, t)),
            scratch_shapes=[pltpu.VMEM((NUM_TAPS, tpix), compute_dtype)],
        ),
        compiler_params=pltpu.CompilerParams(
            dimension_semantics=("parallel", "parallel"),
            vmem_limit_bytes=vmem_limit),
        cost_estimate=pl.CostEstimate(flops=flops, transcendentals=0,
                                      bytes_accessed=bytes_accessed),
    )(slabs, w_mat)

    out = out[:, :, :H * W]                          # drop tile padding (if any)
    return out.reshape(N, NUM_FILTERS, H, W)         # NCHW directly, no transpose


# ---------------------------- reference (pure JAX) --------------------------

def gabor_features_ref(x):
    bank = jnp.asarray(gabor_bank())[:, None]                # (48, 1, 8, 8)
    return jax.lax.conv_general_dilated(
        x.astype(jnp.float32), bank, window_strides=(1, 1),
        padding=[(PAD_TOP, PAD_BOT), (PAD_LEFT, PAD_RIGHT)],
        dimension_numbers=("NCHW", "OIHW", "NCHW"),
        precision=jax.lax.Precision.HIGHEST)


if __name__ == "__main__":
    key = jax.random.PRNGKey(0)
    x = jax.random.normal(key, (2, 1, 16, 16), dtype=jnp.float32)

    y_ref = jax.block_until_ready(gabor_features_ref(x))

    # Strict-accuracy f32 path.
    f32_fn = jax.jit(lambda a: gabor_features(a, compute_dtype=jnp.float32))
    y32 = jax.block_until_ready(f32_fn(x))
    assert y32.shape == (2, NUM_FILTERS, 16, 16) and y32.dtype == jnp.float32
    np.testing.assert_allclose(np.asarray(y32), np.asarray(y_ref),
                               rtol=1e-4, atol=1e-4)

    # Default bf16-patch path (MXU-friendly on v6e/v7x); relaxed tolerance.
    ybf = jax.block_until_ready(jax.jit(gabor_features)(x))
    assert ybf.shape == (2, NUM_FILTERS, 16, 16) and ybf.dtype == jnp.float32
    np.testing.assert_allclose(np.asarray(ybf), np.asarray(y_ref),
                               rtol=3e-2, atol=6e-2)

    # Exercise the padded / ragged-tile paths (H*W not a multiple of 128, odd W).
    for shape in [(1, 1, 20, 24), (1, 1, 17, 13)]:
        xs = jax.random.normal(jax.random.PRNGKey(1), shape, dtype=jnp.float32)
        ys = jax.block_until_ready(f32_fn(xs))
        np.testing.assert_allclose(np.asarray(ys),
                                   np.asarray(gabor_features_ref(xs)),
                                   rtol=1e-4, atol=1e-4)

    print("KERNEL_OK")
</pallas_src>

<mosaic_0001>
module attributes {stable_mosaic.version = 11 : i64} {
  func.func @kernel(%arg0: i32, %arg1: i32, %arg2: memref<1x1x8x368xf32, #tpu.memory_space<vmem>>, %arg3: memref<48x64xf32, #tpu.memory_space<vmem>>, %arg4: memref<1x48x256xf32, #tpu.memory_space<vmem>>, %arg5: memref<64x256xf32, #tpu.memory_space<vmem>>) attributes {dimension_semantics = [#tpu.dimension_semantics<parallel>, #tpu.dimension_semantics<parallel>], iteration_bounds = array<i64: 1, 2>, scalar_prefetch = 0 : i64, scratch_operands = 1 : i64, tpu.core_type = #tpu.core_type<tc>, window_params = [{transform_indices = @transform_0, window_bounds = array<i64: 1, 1, 8, 368>}, {pipeline_mode = #tpu.pipeline_mode<synchronous>, transform_indices = @transform_1, window_bounds = array<i64: 48, 64>}, {transform_indices = @transform_2, window_bounds = array<i64: 1, 48, 256>}]} {
    %c0 = arith.constant 0 : index
    %c0_0 = arith.constant 0 : index
    %c0_1 = arith.constant 0 : index
    %c0_2 = arith.constant 0 : index
    %0 = vector.load %arg2[%c0, %c0_0, %c0_1, %c0_2] : memref<1x1x8x368xf32, #tpu.memory_space<vmem>>, vector<1x1x8x256xf32>
    %1 = vector.shape_cast %0 : vector<1x1x8x256xf32> to vector<8x256xf32>
    %c0_3 = arith.constant 0 : index
    %c0_4 = arith.constant 0 : index
    %2 = vector.load %arg5[%c0_3, %c0_4] : memref<64x256xf32, #tpu.memory_space<vmem>>, vector<8x256xf32>
    tpu.vector_store %arg5[%c0_3, %c0_4], %1 {strides = array<i32>} : memref<64x256xf32, #tpu.memory_space<vmem>>, vector<8x256xf32>,
    %c0_5 = arith.constant 0 : index
    %c0_6 = arith.constant 0 : index
    %c0_7 = arith.constant 0 : index
    %c16 = arith.constant 16 : index
    %3 = vector.load %arg2[%c0_5, %c0_6, %c0_7, %c16] : memref<1x1x8x368xf32, #tpu.memory_space<vmem>>, vector<1x1x8x256xf32>
    %4 = vector.shape_cast %3 : vector<1x1x8x256xf32> to vector<8x256xf32>
    %c8 = arith.constant 8 : index
    %c0_8 = arith.constant 0 : index
    %5 = vector.load %arg5[%c8, %c0_8] : memref<64x256xf32, #tpu.memory_space<vmem>>, vector<8x256xf32>
    tpu.vector_store %arg5[%c8, %c0_8], %4 {strides = array<i32>} : memref<64x256xf32, #tpu.memory_space<vmem>>, vector<8x256xf32>,
    %c0_9 = arith.constant 0 : index
    %c0_10 = arith.constant 0 : index
    %c0_11 = arith.constant 0 : index
    %c32 = arith.constant 32 : index
    %6 = vector.load %arg2[%c0_9, %c0_10, %c0_11, %c32] : memref<1x1x8x368xf32, #tpu.memory_space<vmem>>, vector<1x1x8x256xf32>
    %7 = vector.shape_cast %6 : vector<1x1x8x256xf32> to vector<8x256xf32>
    %c16_12 = arith.constant 16 : index
    %c0_13 = arith.constant 0 : index
    %8 = vector.load %arg5[%c16_12, %c0_13] : memref<64x256xf32, #tpu.memory_space<vmem>>, vector<8x256xf32>
    tpu.vector_store %arg5[%c16_12, %c0_13], %7 {strides = array<i32>} : memref<64x256xf32, #tpu.memory_space<vmem>>, vector<8x256xf32>,
    %c0_14 = arith.constant 0 : index
    %c0_15 = arith.constant 0 : index
    %c0_16 = arith.constant 0 : index
    %c48 = arith.constant 48 : index
    %9 = vector.load %arg2[%c0_14, %c0_15, %c0_16, %c48] : memref<1x1x8x368xf32, #tpu.memory_space<vmem>>, vector<1x1x8x256xf32>
    %10 = vector.shape_cast %9 : vector<1x1x8x256xf32> to vector<8x256xf32>
    %c24 = arith.constant 24 : index
    %c0_17 = arith.constant 0 : index
    %11 = vector.load %arg5[%c24, %c0_17] : memref<64x256xf32, #tpu.memory_space<vmem>>, vector<8x256xf32>
    tpu.vector_store %arg5[%c24, %c0_17], %10 {strides = array<i32>} : memref<64x256xf32, #tpu.memory_space<vmem>>, vector<8x256xf32>,
    %c0_18 = arith.constant 0 : index
    %c0_19 = arith.constant 0 : index
    %c0_20 = arith.constant 0 : index
    %c64 = arith.constant 64 : index
    %12 = vector.load %arg2[%c0_18, %c0_19, %c0_20, %c64] : memref<1x1x8x368xf32, #tpu.memory_space<vmem>>, vector<1x1x8x256xf32>
    %13 = vector.shape_cast %12 : vector<1x1x8x256xf32> to vector<8x256xf32>
    %c32_21 = arith.constant 32 : index
    %c0_22 = arith.constant 0 : index
    %14 = vector.load %arg5[%c32_21, %c0_22] : memref<64x256xf32, #tpu.memory_space<vmem>>, vector<8x256xf32>
    tpu.vector_store %arg5[%c32_21, %c0_22], %13 {strides = array<i32>} : memref<64x256xf32, #tpu.memory_space<vmem>>, vector<8x256xf32>,
    %c0_23 = arith.constant 0 : index
    %c0_24 = arith.constant 0 : index
    %c0_25 = arith.constant 0 : index
    %c80 = arith.constant 80 : index
    %15 = vector.load %arg2[%c0_23, %c0_24, %c0_25, %c80] : memref<1x1x8x368xf32, #tpu.memory_space<vmem>>, vector<1x1x8x256xf32>
    %16 = vector.shape_cast %15 : vector<1x1x8x256xf32> to vector<8x256xf32>
    %c40 = arith.constant 40 : index
    %c0_26 = arith.constant 0 : index
    %17 = vector.load %arg5[%c40, %c0_26] : memref<64x256xf32, #tpu.memory_space<vmem>>, vector<8x256xf32>
    tpu.vector_store %arg5[%c40, %c0_26], %16 {strides = array<i32>} : memref<64x256xf32, #tpu.memory_space<vmem>>, vector<8x256xf32>,
    %c0_27 = arith.constant 0 : index
    %c0_28 = arith.constant 0 : index
    %c0_29 = arith.constant 0 : index
    %c96 = arith.constant 96 : index
    %18 = vector.load %arg2[%c0_27, %c0_28, %c0_29, %c96] : memref<1x1x8x368xf32, #tpu.memory_space<vmem>>, vector<1x1x8x256xf32>
    %19 = vector.shape_cast %18 : vector<1x1x8x256xf32> to vector<8x256xf32>
    %c48_30 = arith.constant 48 : index
    %c0_31 = arith.constant 0 : index
    %20 = vector.load %arg5[%c48_30, %c0_31] : memref<64x256xf32, #tpu.memory_space<vmem>>, vector<8x256xf32>
    tpu.vector_store %arg5[%c48_30, %c0_31], %19 {strides = array<i32>} : memref<64x256xf32, #tpu.memory_space<vmem>>, vector<8x256xf32>,
    %c0_32 = arith.constant 0 : index
    %c0_33 = arith.constant 0 : index
    %c0_34 = arith.constant 0 : index
    %c112 = arith.constant 112 : index
    %21 = vector.load %arg2[%c0_32, %c0_33, %c0_34, %c112] : memref<1x1x8x368xf32, #tpu.memory_space<vmem>>, vector<1x1x8x256xf32>
    %22 = vector.shape_cast %21 : vector<1x1x8x256xf32> to vector<8x256xf32>
    %c56 = arith.constant 56 : index
    %c0_35 = arith.constant 0 : index
    %23 = vector.load %arg5[%c56, %c0_35] : memref<64x256xf32, #tpu.memory_space<vmem>>, vector<8x256xf32>
    tpu.vector_store %arg5[%c56, %c0_35], %22 {strides = array<i32>} : memref<64x256xf32, #tpu.memory_space<vmem>>, vector<8x256xf32>,
    %c0_36 = arith.constant 0 : index
    %c0_37 = arith.constant 0 : index
    %24 = vector.load %arg3[%c0_36, %c0_37] : memref<48x64xf32, #tpu.memory_space<vmem>>, vector<48x64xf32>
    %c0_38 = arith.constant 0 : index
    %c0_39 = arith.constant 0 : index
    %25 = vector.load %arg5[%c0_38, %c0_39] : memref<64x256xf32, #tpu.memory_space<vmem>>, vector<64x256xf32>
    %cst = arith.constant dense<0.000000e+00> : vector<48x256xf32>
    %26 = tpu.matmul %24, %25, %cst {dimension_numbers = #tpu.dot_dimension_numbers<[1], [0], [0], [1], [0, 0, 1, 1], [], []>} : vector<48x64xf32>, vector<64x256xf32>, vector<48x256xf32> -> vector<48x256xf32>
    %c0_40 = arith.constant 0 : index
    %c0_41 = arith.constant 0 : index
    %c0_42 = arith.constant 0 : index
    %27 = vector.load %arg4[%c0_40, %c0_41, %c0_42] : memref<1x48x256xf32, #tpu.memory_space<vmem>>, vector<1x48x256xf32>
    %28 = vector.shape_cast %27 : vector<1x48x256xf32> to vector<48x256xf32>
    %29 = vector.shape_cast %26 : vector<48x256xf32> to vector<1x48x256xf32>
    tpu.vector_store %arg4[%c0_40, %c0_41, %c0_42], %29 {strides = array<i32>} : memref<1x48x256xf32, #tpu.memory_space<vmem>>, vector<1x48x256xf32>,
    return
  }
  func.func @transform_0(%arg0: i32, %arg1: i32) -> (i32, i32, i32, i32) {
    %c0_i32 = arith.constant 0 : i32
    %c0_i32_0 = arith.constant 0 : i32
    %c0_i32_1 = arith.constant 0 : i32
    return %arg1, %arg0, %c0_i32, %c0_i32_0 : i32, i32, i32, i32
  }
  func.func @transform_1(%arg0: i32, %arg1: i32) -> (i32, i32) {
    %c0_i32 = arith.constant 0 : i32
    %c0_i32_0 = arith.constant 0 : i32
    %c0_i32_1 = arith.constant 0 : i32
    return %c0_i32, %c0_i32_0 : i32, i32
  }
  func.func @transform_2(%arg0: i32, %arg1: i32) -> (i32, i32, i32) {
    %c0_i32 = arith.constant 0 : i32
    %c0_i32_0 = arith.constant 0 : i32
    return %arg1, %c0_i32, %arg0 : i32, i32, i32
  }
}

</mosaic_0001>

<llo_original>
// kernel: _lambda_.1
$region0: #{_lambda_.1}
  #allocation0 [shape = 'u32[]', space=smem, size = 0x4, offset = 0x4, fixed_abs, tag = 'smem constant byte address 0x4 - core index']
  #allocation1 [shape = 'u32[144,128]{1,0:T(1,128)}', space=vmem, size = 0x12000, scoped, tag = 'internal scratch']
  #allocation2 [shape = 'f32[64,256]{1,0:T(8,128)}', space=vmem, size = 0x10000, scoped, tag = 'scratch operand']
  %s0 = inlined_call_operand.vmem [shape: f32[2,1,8,368], index: 0, kind: input, shape index: {}]
  %s1 = inlined_call_operand.vmem [shape: f32[48,64], index: 1, kind: input, shape index: {}]
  %s2 = inlined_call_operand.vmem [shape: f32[2,48,256], index: 2, kind: output, shape index: {}]
  %s3 = sld [smem:[#allocation0]]
  $region41: #{_lambda_.1} parent=0
    _
  %s5 = ssub.s32 1, %s3
  %s6 = scalar_select 0, %s5, %s3
  loop: start=0, step=1, limit=4
  $region2: #{_lambda_.1} parent=0 // loop_pre_header
    _
  $region3: #{_lambda_.1} parent=0 // loop_header
    %s8 = sphi 0, %s12
    %p9 = scmp.ge.s32.totalorder %s8, 4
    %s15 = sphi 0, %s27
    %s16 = sphi 0, %s23
    %s17 = sphi 0, %s15
    %s18 = sphi 0, %s16
    %s19 = sphi 0, %s17
    %s20 = sphi 0, %s18
    %s32 = sphi 0, %s34
    %s35 = sphi 0, %s32
    %s36 = sphi 0, %s35
    %s52 = sphi 0, %s36
    %s56 = sphi 0, %s56
    %s58 = sphi 0, %s56
    %s59 = sphi 0, %s58
    %s73 = sphi 0, %s59
    %s81 = sphi 0, %s83
    %s84 = sphi 0, %s81
    %s85 = sphi 0, %s84
    %s101 = sphi 0, %s85
  $region4: #{_lambda_.1} parent=0 // loop_header_branch
    %11 = sbr.rel (%p9) target = $region8
  $region5: #{_lambda_.1} parent=0 // loop_body
    %s13 = ssub.s32 %s8, 1
    %s14 = ssub.s32 %s8, 2
    %s21 = sadd.s32 1, %s16
    %p22 = scmp.ge.s32.totalorder %s21, 2
    %s23 = scalar_select %p22, 0, %s21
    %s24 = sadd.s32 1, %s15
    %s25 = scalar_select %p22, %s24, %s15
    %p26 = scmp.ge.s32.totalorder %s25, 1
    %s27 = scalar_select %p26, 0, %s25
    %s28 = ssub.s32 %s16, %s23
    %s29 = ssub.s32 %s15, %s27
    %s30 = sor.u32 %s28, %s29
    %p31 = scmp.eq.s32.totalorder %s30, 0
    %s33 = sadd.s32 %s32, 1
    %s34 = scalar_select %p31, %s32, %s33
    %p37 = pneg %p31
    %p38 = scmp.eq.s32.totalorder %s8, 1
    %p39 = por %p37, %p38
    %p40 = scmp.ne.s32.totalorder %s32, %s35
    %p41 = scmp.eq.s32.totalorder %s8, 0
    %p42 = por %p40, %p41
    %p43 = scmp.ne.s32.totalorder %s32, %s35
    %p44 = scmp.eq.s32.totalorder %s13, 1
    %p45 = por %p43, %p44
    %p46 = scmp.ne.s32.totalorder %s35, %s36
    %p47 = scmp.eq.s32.totalorder %s13, 0
    %p48 = por %p46, %p47
    %p49 = scmp.ne.s32.totalorder %s35, %s36
    %p50 = scmp.eq.s32.totalorder %s14, 1
    %p51 = por %p49, %p50
    %p53 = scmp.ne.s32.totalorder %s36, %s52
    %p54 = scmp.eq.s32.totalorder %s14, 0
    %p55 = por %p53, %p54
    %s57 = sadd.s32 %s56, 1
    %p60 = scmp.eq.s32.totalorder %s8, 1
    %p61 = scmp.ne.s32.totalorder %s56, %s58
    %p62 = scmp.eq.s32.totalorder %s8, 0
    %p63 = por %p61, %p62
    %p64 = scmp.ne.s32.totalorder %s56, %s58
    %p65 = scmp.eq.s32.totalorder %s13, 1
    %p66 = por %p64, %p65
    %p67 = scmp.ne.s32.totalorder %s58, %s59
    %p68 = scmp.eq.s32.totalorder %s13, 0
    %p69 = por %p67, %p68
    %p70 = scmp.ne.s32.totalorder %s58, %s59
    %p71 = scmp.eq.s32.totalorder %s14, 1
    %p72 = por %p70, %p71
    %p74 = scmp.ne.s32.totalorder %s59, %s73
    %p75 = scmp.eq.s32.totalorder %s14, 0
    %p76 = por %p74, %p75
    %s77 = ssub.s32 %s16, %s23
    %s78 = ssub.s32 %s15, %s27
    %s79 = sor.u32 %s77, %s78
    %p80 = scmp.eq.s32.totalorder %s79, 0
    %s82 = sadd.s32 %s81, 1
    %s83 = scalar_select %p80, %s81, %s82
    %p86 = pneg %p80
    %p87 = scmp.eq.s32.totalorder %s8, 1
    %p88 = por %p86, %p87
    %p89 = scmp.ne.s32.totalorder %s81, %s84
    %p90 = scmp.eq.s32.totalorder %s8, 0
    %p91 = por %p89, %p90
    %p92 = scmp.ne.s32.totalorder %s81, %s84
    %p93 = scmp.eq.s32.totalorder %s13, 1
    %p94 = por %p92, %p93
    %p95 = scmp.ne.s32.totalorder %s84, %s85
    %p96 = scmp.eq.s32.totalorder %s13, 0
    %p97 = por %p95, %p96
    %p98 = scmp.ne.s32.totalorder %s84, %s85
    %p99 = scmp.eq.s32.totalorder %s14, 1
    %p100 = por %p98, %p99
    %p102 = scmp.ne.s32.totalorder %s85, %s101
    %p103 = scmp.eq.s32.totalorder %s14, 0
    %p104 = por %p102, %p103
    %p105 = scmp.le.s32.totalorder 1, %s8
    %p106 = scmp.lt.s32.totalorder %s8, 3
    %p107 = pnand %p105, %p106
    %p108 = pneg %p107
    // Predicated region
    $region9: #{_lambda_.1} parent=5 // pred_check
      _
    $region10: #{_lambda_.1} parent=5 // pred_check_branch
      %110 = sbr.rel (%p107) target = $region12
    $region11: #{_lambda_.1} parent=5 // pred_region
      %s111 = ssub.s32 %s8, 1
      // Predicated region
      $region13: #{_lambda_.1} parent=11 // pred_check
        %p112 = pneg %p69
      $region14: #{_lambda_.1} parent=11 // pred_check_branch
        %114 = sbr.rel (%p112) target = $region16
      $region15: #{_lambda_.1} parent=11 // pred_region
        _
      $region16: #{_lambda_.1} parent=11 // pred_fallthru
        _
    $region12: #{_lambda_.1} parent=5 // pred_fallthru
      _
    %p115 = scmp.lt.s32.totalorder %s8, 2
    // Predicated region
    $region17: #{_lambda_.1} parent=5 // pred_check
      %p116 = pneg %p115
    $region18: #{_lambda_.1} parent=5 // pred_check_branch
      %118 = sbr.rel (%p116) target = $region20
    $region19: #{_lambda_.1} parent=5 // pred_region
      // Predicated region
      $region21: #{_lambda_.1} parent=19 // pred_check
        %p119 = pneg %p42
      $region22: #{_lambda_.1} parent=19 // pred_check_branch
        %121 = sbr.rel (%p119) target = $region24
      $region23: #{_lambda_.1} parent=19 // pred_region
        %p122 = scmp.lt.s32.totalorder %s16, 1
        %s123 = scalar_select %p122, %s16, 1
        %p124 = scmp.lt.s32.totalorder %s15, 0
        %s125 = scalar_select %p124, %s15, 0
        %s126 = smul.addr %s125, 3
        %s127 = smul.addr %s123, 3
        %s128 = sadd.s32 %s126, %s127
        %s129 = smul.addr %s128, 8
        %s130 = scalar_lea.vmem %s0, %s129
      $region24: #{_lambda_.1} parent=19 // pred_fallthru
        _
    $region20: #{_lambda_.1} parent=5 // pred_fallthru
      _
    %p131 = scmp.le.s32.totalorder 1, %s8
    %p132 = scmp.lt.s32.totalorder %s8, 3
    %p133 = pnand %p131, %p132
    %p134 = pneg %p133
    // Predicated region
    $region25: #{_lambda_.1} parent=5 // pred_check
      _
    $region26: #{_lambda_.1} parent=5 // pred_check_branch
      %136 = sbr.rel (%p133) target = $region28
    $region27: #{_lambda_.1} parent=5 // pred_region
      %s137 = ssub.s32 %s8, 1
      %p138 = scmp.lt.s32.totalorder %s18, 1
      %s139 = scalar_select %p138, %s18, 1
      %p140 = scmp.lt.s32.totalorder %s17, 0
      %s141 = scalar_select %p140, %s17, 0
      %s142 = smul.addr %s141, 3
      %s143 = smul.addr %s139, 3
      %s144 = sadd.s32 %s142, %s143
      %s145 = smul.addr %s144, 8
      %s146 = scalar_lea.vmem %s0, %s145
      %p147 = pneg %p48
      %p148 = pneg %p45
      %p149 = pneg %p69
      %p150 = pneg %p66
      %p151 = pneg %p97
      %p152 = pneg %p94
      %s153 = smul.u32 2, %s17
      %p154 = scmp.lt.s32.totalorder %s18, 1
      %s155 = scalar_select %p154, %s18, 1
      %p156 = scmp.lt.s32.totalorder %s153, 1
      %s157 = scalar_select %p156, %s153, 1
      %s158 = smul.addr %s155, 12
      %s159 = sadd.s32 %s157, %s158
      %s160 = smul.addr %s159, 8
      %s161 = scalar_lea.vmem %s2, %s160
      %p162 = scmp.lt.s32.totalorder %s18, 1
      %s163 = scalar_select %p162, %s18, 1
      %p164 = scmp.lt.s32.totalorder %s17, 0
      %s165 = scalar_select %p164, %s17, 0
      %s166 = smul.addr %s165, 3
      %s167 = smul.addr %s163, 3
      %s168 = sadd.s32 %s166, %s167
      %s169 = smul.addr %s168, 8
      %s170 = scalar_lea.vmem %s0, %s169
      %s171 = smul.u32 2, %s17
      %p172 = scmp.lt.s32.totalorder %s18, 1
      %s173 = scalar_select %p172, %s18, 1
      %p174 = scmp.lt.s32.totalorder %s171, 1
      %s175 = scalar_select %p174, %s171, 1
      %s176 = smul.addr %s173, 12
      %s177 = sadd.s32 %s175, %s176
      %s178 = smul.addr %s177, 8
      %s179 = scalar_lea.vmem %s2, %s178
      %s180 = smul.u32 2, %s17
      %v181 = vld [vmem:[%s170] sm:$0xff]
      %v182 = vld [vmem:[%s170 + $0x8] sm:$0xff]
      %183 = vst [vmem:[#allocation2] sm:$0xff] %v181
      %184 = vst [vmem:[#allocation2 + $0x8] sm:$0xff] %v182
      %v185 = vld [vmem:[%s170] sm:$0xff]
      %v186 = vld [vmem:[%s170 + $0x8] sm:$0xff]
      %v187 = vld [vmem:[%s170 + $0x10] sm:$0xff]
      %191 = vrot.lane.b32.xlu0 %v185, 112
      %v192 = vpop.permute.xlu0 %191
      %193 = vrot.lane.b32.xlu0 %v186, 112
      %v194 = vpop.permute.xlu0 %193
      %195 = vrot.lane.b32.xlu0 %v187, 112
      %v196 = vpop.permute.xlu0 %195
      %vm197 = vcmask 916480
      %v198 = vsel %vm197, %v192, %v194
      %v199 = vsel %vm197, %v194, %v196
      %202 = vst [vmem:[#allocation2 + $0x10] sm:$0xff] %v198
      %203 = vst [vmem:[#allocation2 + $0x18] sm:$0xff] %v199
      %v204 = vld [vmem:[%s170] sm:$0xff]
      %v205 = vld [vmem:[%s170 + $0x8] sm:$0xff]
      %v206 = vld [vmem:[%s170 + $0x10] sm:$0xff]
      %210 = vrot.lane.b32.xlu0 %v204, 96
      %v211 = vpop.permute.xlu0 %210
      %212 = vrot.lane.b32.xlu0 %v205, 96
      %v213 = vpop.permute.xlu0 %212
      %214 = vrot.lane.b32.xlu0 %v206, 96
      %v215 = vpop.permute.xlu0 %214
      %vm216 = vcmask 785408
      %v217 = vsel %vm216, %v211, %v213
      %v218 = vsel %vm216, %v213, %v215
      %221 = vst [vmem:[#allocation2 + $0x20] sm:$0xff] %v217
      %222 = vst [vmem:[#allocation2 + $0x28] sm:$0xff] %v218
      %v223 = vld [vmem:[%s170] sm:$0xff]
      %v224 = vld [vmem:[%s170 + $0x8] sm:$0xff]
      %v225 = vld [vmem:[%s170 + $0x10] sm:$0xff]
      %229 = vrot.lane.b32.xlu0 %v223, 80
      %v230 = vpop.permute.xlu0 %229
      %231 = vrot.lane.b32.xlu0 %v224, 80
      %v232 = vpop.permute.xlu0 %231
      %233 = vrot.lane.b32.xlu0 %v225, 80
      %v234 = vpop.permute.xlu0 %233
      %vm235 = vcmask 654336
      %v236 = vsel %vm235, %v230, %v232
      %v237 = vsel %vm235, %v232, %v234
      %240 = vst [vmem:[#allocation2 + $0x30] sm:$0xff] %v236
      %241 = vst [vmem:[#allocation2 + $0x38] sm:$0xff] %v237
      %v242 = vld [vmem:[%s170] sm:$0xff]
      %v243 = vld [vmem:[%s170 + $0x8] sm:$0xff]
      %v244 = vld [vmem:[%s170 + $0x10] sm:$0xff]
      %248 = vrot.lane.b32.xlu0 %v242, 64
      %v249 = vpop.permute.xlu0 %248
      %250 = vrot.lane.b32.xlu0 %v243, 64
      %v251 = vpop.permute.xlu0 %250
      %252 = vrot.lane.b32.xlu0 %v244, 64
      %v253 = vpop.permute.xlu0 %252
      %vm254 = vcmask 523264
      %v255 = vsel %vm254, %v249, %v251
      %v256 = vsel %vm254, %v251, %v253
      %259 = vst [vmem:[#allocation2 + $0x40] sm:$0xff] %v255
      %260 = vst [vmem:[#allocation2 + $0x48] sm:$0xff] %v256
      %v261 = vld [vmem:[%s170] sm:$0xff]
      %v262 = vld [vmem:[%s170 + $0x8] sm:$0xff]
      %v263 = vld [vmem:[%s170 + $0x10] sm:$0xff]
      %267 = vrot.lane.b32.xlu0 %v261, 48
      %v268 = vpop.permute.xlu0 %267
      %269 = vrot.lane.b32.xlu0 %v262, 48
      %v270 = vpop.permute.xlu0 %269
      %271 = vrot.lane.b32.xlu0 %v263, 48
      %v272 = vpop.permute.xlu0 %271
      %vm273 = vcmask 392192
      %v274 = vsel %vm273, %v268, %v270
      %v275 = vsel %vm273, %v270, %v272
      %278 = vst [vmem:[#allocation2 + $0x50] sm:$0xff] %v274
      %279 = vst [vmem:[#allocation2 + $0x58] sm:$0xff] %v275
      %v280 = vld [vmem:[%s170] sm:$0xff]
      %v281 = vld [vmem:[%s170 + $0x8] sm:$0xff]
      %v282 = vld [vmem:[%s170 + $0x10] sm:$0xff]
      %286 = vrot.lane.b32.xlu0 %v280, 32
      %v287 = vpop.permute.xlu0 %286
      %288 = vrot.lane.b32.xlu0 %v281, 32
      %v289 = vpop.permute.xlu0 %288
      %290 = vrot.lane.b32.xlu0 %v282, 32
      %v291 = vpop.permute.xlu0 %290
      %vm292 = vcmask 261120
      %v293 = vsel %vm292, %v287, %v289
      %v294 = vsel %vm292, %v289, %v291
      %297 = vst [vmem:[#allocation2 + $0x60] sm:$0xff] %v293
      %298 = vst [vmem:[#allocation2 + $0x68] sm:$0xff] %v294
      %v299 = vld [vmem:[%s170] sm:$0xff]
      %v300 = vld [vmem:[%s170 + $0x8] sm:$0xff]
      %v301 = vld [vmem:[%s170 + $0x10] sm:$0xff]
      %305 = vrot.lane.b32.xlu0 %v299, 16
      %v306 = vpop.permute.xlu0 %305
      %307 = vrot.lane.b32.xlu0 %v300, 16
      %v308 = vpop.permute.xlu0 %307
      %309 = vrot.lane.b32.xlu0 %v301, 16
      %v310 = vpop.permute.xlu0 %309
      %vm311 = vcmask 130048
      %v312 = vsel %vm311, %v306, %v308
      %v313 = vsel %vm311, %v308, %v310
      %316 = vst [vmem:[#allocation2 + $0x70] sm:$0xff] %v312
      %317 = vst [vmem:[#allocation2 + $0x78] sm:$0xff] %v313
      %v318 = vld [vmem:[%s1] sm:$0xff]
      %v319 = vld [vmem:[%s1 + $0x8] sm:$0xff]
      %v320 = vld [vmem:[%s1 + $0x10] sm:$0xff]
      %v321 = vld [vmem:[%s1 + $0x18] sm:$0xff]
      %v322 = vld [vmem:[%s1 + $0x20] sm:$0xff]
      %v323 = vld [vmem:[%s1 + $0x28] sm:$0xff]
      %v324 = vld [vmem:[#allocation2] sm:$0xff]
      %v325 = vld [vmem:[#allocation2 + $0x8] sm:$0xff]
      %v326 = vld [vmem:[#allocation2 + $0x10] sm:$0xff]
      %v327 = vld [vmem:[#allocation2 + $0x18] sm:$0xff]
      %v328 = vld [vmem:[#allocation2 + $0x20] sm:$0xff]
      %v329 = vld [vmem:[#allocation2 + $0x28] sm:$0xff]
      %v330 = vld [vmem:[#allocation2 + $0x30] sm:$0xff]
      %v331 = vld [vmem:[#allocation2 + $0x38] sm:$0xff]
      %v332 = vld [vmem:[#allocation2 + $0x40] sm:$0xff]
      %v333 = vld [vmem:[#allocation2 + $0x48] sm:$0xff]
      %v334 = vld [vmem:[#allocation2 + $0x50] sm:$0xff]
      %v335 = vld [vmem:[#allocation2 + $0x58] sm:$0xff]
      %v336 = vld [vmem:[#allocation2 + $0x60] sm:$0xff]
      %v337 = vld [vmem:[#allocation2 + $0x68] sm:$0xff]
      %v338 = vld [vmem:[#allocation2 + $0x70] sm:$0xff]
      %v339 = vld [vmem:[#allocation2 + $0x78] sm:$0xff]
      %v341 = vsel %vm254, %v318, 0
      %v344 = vsel %vm254, %v319, 0
      %v347 = vsel %vm254, %v320, 0
      %v350 = vsel %vm254, %v321, 0
      %v353 = vsel %vm254, %v322, 0
      %v356 = vsel %vm254, %v323, 0
      %358 = vmatprep.subr.mxu0 %v325
      %359 = vmatpush1.msra.mxu0 %v324
      %360 = vmatprep.subr.mxu0 %v327
      %361 = vmatpush1.msra.mxu0 %v326
      %362 = vmatprep.subr.mxu0 %v329
      %363 = vmatpush1.msra.mxu0 %v328
      %364 = vmatprep.subr.mxu0 %v331
      %365 = vmatpush1.msra.mxu0 %v330
      %366 = vmatprep.subr.mxu0 %v333
      %367 = vmatpush1.msra.mxu0 %v332
      %368 = vmatprep.subr.mxu0 %v335
      %369 = vmatpush1.msra.mxu0 %v334
      %370 = vmatprep.subr.mxu0 %v337
      %371 = vmatpush1.msra.mxu0 %v336
      %372 = vmatprep.subr.mxu0 %v339
      %373 = vmatpush1.msra.mxu0 %v338
      %374 = vmatprep.subr.mxu0 0.0
      %375 = vmatpush1.msra.mxu0 0.0
      %376 = vmatprep.subr.mxu0 0.0
      %377 = vmatpush1.msra.mxu0 0.0
      %378 = vmatprep.subr.mxu0 0.0
      %379 = vmatpush1.msra.mxu0 0.0
      %380 = vmatprep.subr.mxu0 0.0
      %381 = vmatpush1.msra.mxu0 0.0
      %382 = vmatprep.subr.mxu0 0.0
      %383 = vmatpush1.msra.mxu0 0.0
      %384 = vmatprep.subr.mxu0 0.0
      %385 = vmatpush1.msra.mxu0 0.0
      %386 = vmatprep.subr.mxu0 0.0
      %387 = vmatpush1.msra.mxu0 0.0
      %388 = vmatprep.subr.mxu0 0.0
      %389 = vmatpush1.msra.mxu0 0.0
      %390 = vmatprep.subr.mxu0 0.0
      %391 = vmatpush1.msra.mxu0 0.0
      %392 = vmatprep.subr.mxu0 0.0
      %393 = vmatpush1.msra.mxu0 0.0
      %394 = vmatprep.subr.mxu0 0.0
      %395 = vmatpush1.msra.mxu0 0.0
      %396 = vmatprep.subr.mxu0 0.0
      %397 = vmatpush1.msra.mxu0 0.0
      %398 = vmatprep.subr.mxu0 0.0
      %399 = vmatpush1.msra.mxu0 0.0
      %400 = vmatprep.subr.mxu0 0.0
      %401 = vmatpush1.msra.mxu0 0.0
      %402 = vmatprep.subr.mxu0 0.0
      %403 = vmatpush1.msra.mxu0 0.0
      %404 = vmatprep.subr.mxu0 0.0
      %405 = vmatpush1.msra.mxu0 0.0
      %406 = vmatprep.subr.mxu0 0.0
      %407 = vmatpush1.msra.mxu0 0.0
      %408 = vmatprep.subr.mxu0 0.0
      %409 = vmatpush1.msra.mxu0 0.0
      %410 = vmatprep.subr.mxu0 0.0
      %411 = vmatpush1.msra.mxu0 0.0
      %412 = vmatprep.subr.mxu0 0.0
      %413 = vmatpush1.msra.mxu0 0.0
      %414 = vmatprep.subr.mxu0 0.0
      %415 = vmatpush1.msra.mxu0 0.0
      %416 = vmatprep.subr.mxu0 0.0
      %417 = vmatpush1.msra.mxu0 0.0
      %418 = vmatprep.subr.mxu0 0.0
      %419 = vmatpush1.msra.mxu0 0.0
      %420 = vmatprep.subr.mxu0 0.0
      %421 = vmatpush1.msra.mxu0 0.0
      %422 = vmatprep.mubr.f32.mxu0 0.0
      %423 = vmatmul.mubr.f32.gmra.mrb[0].mxu0 %v341
      %v424 = vpop.f32.mrb[0].mxu0
      %v425 = vadd.f32 0.0, %v424
      %v426 = vpop.f32.mrb[0].mxu0
      %v427 = vadd.f32 0.0, %v426
      %428 = vmatprep.mubr.f32.mxu0 0.0
      %429 = vmatmul.mubr.f32.gmra.mrb[0].mxu0 %v344
      %v430 = vpop.f32.mrb[0].mxu0
      %v431 = vadd.f32 0.0, %v430
      %v432 = vpop.f32.mrb[0].mxu0
      %v433 = vadd.f32 0.0, %v432
      %434 = vmatprep.mubr.f32.mxu0 0.0
      %435 = vmatmul.mubr.f32.gmra.mrb[0].mxu0 %v347
      %v436 = vpop.f32.mrb[0].mxu0
      %v437 = vadd.f32 0.0, %v436
      %v438 = vpop.f32.mrb[0].mxu0
      %v439 = vadd.f32 0.0, %v438
      %440 = vmatprep.mubr.f32.mxu0 0.0
      %441 = vmatmul.mubr.f32.gmra.mrb[0].mxu0 %v350
      %v442 = vpop.f32.mrb[0].mxu0
      %v443 = vadd.f32 0.0, %v442
      %v444 = vpop.f32.mrb[0].mxu0
      %v445 = vadd.f32 0.0, %v444
      %446 = vmatprep.mubr.f32.mxu0 0.0
      %447 = vmatmul.mubr.f32.gmra.mrb[0].mxu0 %v353
      %v448 = vpop.f32.mrb[0].mxu0
      %v449 = vadd.f32 0.0, %v448
      %v450 = vpop.f32.mrb[0].mxu0
      %v451 = vadd.f32 0.0, %v450
      %452 = vmatprep.mubr.f32.mxu0 0.0
      %453 = vmatmul.mubr.f32.gmra.mrb[0].mxu0 %v356
      %v454 = vpop.f32.mrb[0].mxu0
      %v455 = vadd.f32 0.0, %v454
      %v456 = vpop.f32.mrb[0].mxu0
      %v457 = vadd.f32 0.0, %v456
      %458 = vdwg.mxu0
      %459 = vst [vmem:[%s179] sm:$0xff] %v425
      %460 = vst [vmem:[%s179 + $0x8] sm:$0xff] %v427
      %461 = vst [vmem:[%s179 + $0x10] sm:$0xff] %v431
      %462 = vst [vmem:[%s179 + $0x18] sm:$0xff] %v433
      %463 = vst [vmem:[%s179 + $0x20] sm:$0xff] %v437
      %464 = vst [vmem:[%s179 + $0x28] sm:$0xff] %v439
      %465 = vst [vmem:[%s179 + $0x30] sm:$0xff] %v443
      %466 = vst [vmem:[%s179 + $0x38] sm:$0xff] %v445
      %467 = vst [vmem:[%s179 + $0x40] sm:$0xff] %v449
      %468 = vst [vmem:[%s179 + $0x48] sm:$0xff] %v451
      %469 = vst [vmem:[%s179 + $0x50] sm:$0xff] %v455
      %470 = vst [vmem:[%s179 + $0x58] sm:$0xff] %v457
      %s471 = smul.u32 2, %s17
      %p472 = scmp.lt.s32.totalorder %s18, 1
      %s473 = scalar_select %p472, %s18, 1
      %p474 = scmp.lt.s32.totalorder %s471, 1
      %s475 = scalar_select %p474, %s471, 1
      %s476 = smul.addr %s473, 12
      %s477 = sadd.s32 %s475, %s476
      %s478 = smul.addr %s477, 8
      %s479 = scalar_lea.vmem %s2, %s478
      // Predicated region
      $region29: #{_lambda_.1} parent=27 // pred_check
        %p480 = pneg %p94
      $region30: #{_lambda_.1} parent=27 // pred_check_branch
        %482 = sbr.rel (%p480) target = $region32
      $region31: #{_lambda_.1} parent=27 // pred_region
        %s483 = smul.u32 2, %s17
      $region32: #{_lambda_.1} parent=27 // pred_fallthru
        _
    $region28: #{_lambda_.1} parent=5 // pred_fallthru
      _
    %p484 = scmp.le.s32.totalorder 2, %s8
    // Predicated region
    $region33: #{_lambda_.1} parent=5 // pred_check
      %p485 = pneg %p484
    $region34: #{_lambda_.1} parent=5 // pred_check_branch
      %487 = sbr.rel (%p485) target = $region36
    $region35: #{_lambda_.1} parent=5 // pred_region
      %s488 = ssub.s32 %s8, 2
      // Predicated region
      $region37: #{_lambda_.1} parent=35 // pred_check
        %p489 = pneg %p100
      $region38: #{_lambda_.1} parent=35 // pred_check_branch
        %491 = sbr.rel (%p489) target = $region40
      $region39: #{_lambda_.1} parent=35 // pred_region
        %s492 = smul.u32 2, %s19
        %p493 = scmp.lt.s32.totalorder %s20, 1
        %s494 = scalar_select %p493, %s20, 1
        %p495 = scmp.lt.s32.totalorder %s492, 1
        %s496 = scalar_select %p495, %s492, 1
        %s497 = smul.addr %s494, 12
        %s498 = sadd.s32 %s496, %s497
        %s499 = smul.addr %s498, 8
        %s500 = scalar_lea.vmem %s2, %s499
      $region40: #{_lambda_.1} parent=35 // pred_fallthru
        _
    $region36: #{_lambda_.1} parent=5 // pred_fallthru
      _
  $region6: #{_lambda_.1} parent=0 // loop_footer
    %s12 = sadd.s32 1, %s8
  $region7: #{_lambda_.1} parent=0 // loop_footer_branch
    %7 = sbr.rel target = $region3
  $region8: #{_lambda_.1} parent=0 // loop_exit
    _

</llo_original>
